<compile_context>
chip_gen: v7x
topology: tpu7x:2x2x1
jax: 0.10.0
libtpu: 0.0.40
codegen_flags: <defaults>
</compile_context>

<pallas_src>
import functools

import jax
import jax.numpy as jnp
from jax import lax
from jax.experimental import pallas as pl
from jax.experimental.pallas import tpu as pltpu


def gqa_kernel(x_ref, wq_ref, wk_ref, wv_ref, wo_ref, cos_ref, sin_ref,
               o_ref, acc_ref, krot_ref, vcache_ref, qrot_ref,
               *, group_size, head_dim, q_tile):
    """Grid = (batch, kv_group, q_tile)  —  q-tile axis innermost.

    Each step adds one kv-group's contribution for one q tile into a per-batch
    resident f32 accumulator; K/V (+K-RoPE) for the group are cached in VMEM and
    reused across all q tiles of that (batch, group)."""
    g = pl.program_id(1)
    qi = pl.program_id(2)
    n_g = pl.num_programs(1)
    half = head_dim // 2
    T = x_ref.shape[1]

    # Zero the per-batch output accumulator at the first step of each batch.
    @pl.when((g == 0) & (qi == 0))
    def _():
        acc_ref[...] = jnp.zeros_like(acc_ref)

    # Once per (batch, group): K/V projection + K-RoPE into persistent VMEM cache.
    @pl.when(qi == 0)
    def _():
        xkv = x_ref[0]                                                   # (T, d_in) bf16
        k = jnp.dot(xkv, wk_ref[0], preferred_element_type=jnp.float32)  # (T, hd) f32
        v = jnp.dot(xkv, wv_ref[0], preferred_element_type=jnp.float32)  # (T, hd) f32
        cos_k = cos_ref[...]                                             # (T, hd//2) f32
        sin_k = sin_ref[...]
        k1, k2 = k[:, :half], k[:, half:]
        # rotate-half RoPE, split-half form; pack halves lane-adjacent so the
        # score matmul contracts the full head_dim in one MXU pass.
        krot_ref[:, :half] = (k1 * cos_k - k2 * sin_k).astype(krot_ref.dtype)
        krot_ref[:, half:] = (k2 * cos_k + k1 * sin_k).astype(krot_ref.dtype)
        vcache_ref[...] = v.astype(vcache_ref.dtype)

    # Q projection for this (group, q-tile); rows sliced from the resident x block.
    q_start = pl.multiple_of(qi * q_tile, q_tile)
    xq = x_ref[0, pl.ds(q_start, q_tile), :]                             # (tq, d_in) bf16
    q = jnp.dot(xq, wq_ref[0], preferred_element_type=jnp.float32)       # (tq, gsz*hd) f32

    cos_q = cos_ref[pl.ds(q_start, q_tile), :]                           # (tq, hd//2)
    sin_q = sin_ref[pl.ds(q_start, q_tile), :]

    # Causal mask for this q tile against all T kv positions (global row offset).
    row = q_start + lax.broadcasted_iota(jnp.int32, (q_tile, T), 0)
    col = lax.broadcasted_iota(jnp.int32, (q_tile, T), 1)
    causal = col > row

    k_rot = krot_ref[...]                                                # (T, hd) bf16
    v_b = vcache_ref[...]                                                # (T, hd) bf16
    dn = (((1,), (1,)), ((), ()))                                        # q @ k.T (contract last dims)

    # group_size is small (e.g. 2–4); static unroll with direct accumulation into
    # acc_ref keeps only one (tq, T) score slab live per head.
    for hh in range(group_size):
        q_h = q[:, hh * head_dim:(hh + 1) * head_dim]
        q1, q2 = q_h[:, :half], q_h[:, half:]
        qrot_ref[:, :half] = (q1 * cos_q - q2 * sin_q).astype(qrot_ref.dtype)
        qrot_ref[:, half:] = (q2 * cos_q + q1 * sin_q).astype(qrot_ref.dtype)

        # Single K=head_dim contraction on bf16 operands, f32 accumulation.
        scores = lax.dot_general(qrot_ref[...], k_rot, dn,
                                 preferred_element_type=jnp.float32)     # (tq, T)
        scores = jnp.where(causal, -jnp.inf, scores)
        # Reference applies NO softmax and NO 1/sqrt(head_dim) — reproduced literally.
        ctx_h = jnp.dot(scores.astype(v_b.dtype), v_b,
                        preferred_element_type=jnp.float32)              # (tq, hd)

        # Per-head slice of the output projection, indexed through the ref;
        # accumulate directly into the resident f32 accumulator.
        acc_ref[pl.ds(q_start, q_tile), :] += jnp.dot(
            ctx_h.astype(wo_ref.dtype),
            wo_ref[0, hh * head_dim:(hh + 1) * head_dim, :],
            preferred_element_type=jnp.float32)                          # (tq, d_out)

    # Store only once per q tile, after the last group's contribution.
    @pl.when(g == n_g - 1)
    def _():
        o_ref[0, pl.ds(q_start, q_tile), :] = (
            acc_ref[pl.ds(q_start, q_tile), :].astype(o_ref.dtype))


def precompute_rope_params(head_dim, theta_base=10000.0, context_length=4096):
    assert head_dim % 2 == 0
    inv_freq = 1.0 / theta_base ** (
        jnp.arange(0, head_dim // 2, dtype=jnp.float32) / (head_dim // 2))
    positions = jnp.arange(context_length, dtype=jnp.float32)
    angles = positions[:, None] * inv_freq[None, :]
    angles = jnp.concatenate([angles, angles], axis=1)
    return jnp.cos(angles), jnp.sin(angles)
    # TODO(synk): the freq_config (llama-3.1 frequency smoothing) branch is not
    # implemented; the reference default (rope_config=None) is what's modeled.


def prepare_gqa_params(wq, wk, wv, wo, *, num_heads, num_kv_groups,
                       param_dtype=jnp.bfloat16):
    """One-time weight preparation (do at weight-load time, NOT per forward call):
    transpose out of nn.Linear's (out, in) layout, move the kv-group axis to the
    front so per-group weight blocks are full-extent BlockSpec tiles, and cast to
    bf16 so the MXU sees native operands and weight DMA bytes are halved."""
    d_out, d_in = wq.shape
    head_dim = d_out // num_heads
    gsz = num_heads // num_kv_groups
    wq_g = wq.T.reshape(d_in, num_kv_groups, gsz * head_dim).transpose(1, 0, 2)
    wk_g = wk.T.reshape(d_in, num_kv_groups, head_dim).transpose(1, 0, 2)
    wv_g = wv.T.reshape(d_in, num_kv_groups, head_dim).transpose(1, 0, 2)
    wo_g = wo.T.reshape(num_kv_groups, gsz * head_dim, d_out)
    return (wq_g.astype(param_dtype), wk_g.astype(param_dtype),
            wv_g.astype(param_dtype), wo_g.astype(param_dtype))


def group_query_attention(x, wq_g, wk_g, wv_g, wo_g, cos, sin, *,
                          num_heads, num_kv_groups, q_tile=None):
    B, T, d_in = x.shape
    G = num_kv_groups
    gsz = num_heads // num_kv_groups
    head_dim = wk_g.shape[-1]
    d_out = wo_g.shape[-1]
    half = head_dim // 2

    if q_tile is None:
        q_tile = T if T < 128 else 128
    assert T % q_tile == 0, "sequence length must be divisible by the q tile"
    n_q = T // q_tile

    out_dtype = x.dtype
    x_b = x.astype(jnp.bfloat16)                 # bf16 MXU operands, f32 accumulation in-kernel
    # cos/sin halves are identical (angles duplicated), so only half is shipped; kept f32.
    cos_half = cos[:T, :half].astype(jnp.float32)
    sin_half = sin[:T, :half].astype(jnp.float32)

    kernel = functools.partial(gqa_kernel, group_size=gsz,
                               head_dim=head_dim, q_tile=q_tile)

    return pl.pallas_call(
        kernel,
        out_shape=jax.ShapeDtypeStruct((B, T, d_out), out_dtype),
        grid_spec=pltpu.PrefetchScalarGridSpec(
            num_scalar_prefetch=0,
            # batch | kv-group | q-tile (innermost) — weights & K/V cache are
            # reused across all q tiles of a group; x is fetched once per batch.
            grid=(B, G, n_q),
            in_specs=[
                pl.BlockSpec((1, T, d_in), lambda b, g, qi: (b, 0, 0)),                # x (per batch)
                pl.BlockSpec((1, d_in, gsz * head_dim), lambda b, g, qi: (g, 0, 0)),   # Wq  group
                pl.BlockSpec((1, d_in, head_dim), lambda b, g, qi: (g, 0, 0)),         # Wk  group
                pl.BlockSpec((1, d_in, head_dim), lambda b, g, qi: (g, 0, 0)),         # Wv  group
                pl.BlockSpec((1, gsz * head_dim, d_out), lambda b, g, qi: (g, 0, 0)),  # Wo  group
                pl.BlockSpec((T, half), lambda b, g, qi: (0, 0)),                      # cos (all rows)
                pl.BlockSpec((T, half), lambda b, g, qi: (0, 0)),                      # sin (all rows)
            ],
            out_specs=pl.BlockSpec((1, T, d_out), lambda b, g, qi: (b, 0, 0)),
            scratch_shapes=[
                pltpu.VMEM((T, d_out), jnp.float32),        # per-batch f32 output accumulator
                pltpu.VMEM((T, head_dim), jnp.bfloat16),    # rotated-K cache (per batch,group)
                pltpu.VMEM((T, head_dim), jnp.bfloat16),    # V cache          (per batch,group)
                pltpu.VMEM((q_tile, head_dim), jnp.bfloat16),  # packed rotated-Q per head
            ],
        ),
        compiler_params=pltpu.CompilerParams(
            dimension_semantics=("parallel", "arbitrary", "arbitrary"),
            vmem_limit_bytes=48 * 1024 * 1024),
    )(x_b, wq_g, wk_g, wv_g, wo_g, cos_half, sin_half)


if __name__ == "__main__":
    # Small shapes consistent with the module
    B, T, d_in = 2, 8, 32
    d_out, num_heads, num_kv_groups = 32, 4, 2
    context_length = 16
    rope_base = 10000.0
    head_dim = d_out // num_heads

    key = jax.random.PRNGKey(0)
    kx, kq, kk, kv, ko = jax.random.split(key, 5)
    x = jax.random.normal(kx, (B, T, d_in), dtype=jnp.float32)
    # deterministic synthetic weights in nn.Linear convention: (out, in)
    wq = 0.02 * jax.random.normal(kq, (d_out, d_in), dtype=jnp.float32)
    wk = 0.02 * jax.random.normal(kk, (num_kv_groups * head_dim, d_in), dtype=jnp.float32)
    wv = 0.02 * jax.random.normal(kv, (num_kv_groups * head_dim, d_in), dtype=jnp.float32)
    wo = 0.02 * jax.random.normal(ko, (d_out, d_out), dtype=jnp.float32)

    cos, sin = precompute_rope_params(head_dim, rope_base, context_length)

    # One-time (load-time) weight prep — not paid per forward call.
    wq_g, wk_g, wv_g, wo_g = prepare_gqa_params(
        wq, wk, wv, wo, num_heads=num_heads, num_kv_groups=num_kv_groups)

    out = group_query_attention(x, wq_g, wk_g, wv_g, wo_g, cos, sin,
                                num_heads=num_heads, num_kv_groups=num_kv_groups)
    jax.block_until_ready(out)
    assert out.shape == (B, T, d_out)
    # The reference applies -inf masking with no softmax, so only the final
    # (fully unmasked) query row is guaranteed finite — sanity check it.
    assert bool(jnp.all(jnp.isfinite(out[:, -1, :])))
    print("KERNEL_OK")
</pallas_src>

<mosaic_0001>
module attributes {stable_mosaic.version = 11 : i64} {
  func.func @gqa_kernel(%arg0: i32, %arg1: i32, %arg2: i32, %arg3: memref<1x8x32xbf16, #tpu.memory_space<vmem>>, %arg4: memref<1x32x16xbf16, #tpu.memory_space<vmem>>, %arg5: memref<1x32x8xbf16, #tpu.memory_space<vmem>>, %arg6: memref<1x32x8xbf16, #tpu.memory_space<vmem>>, %arg7: memref<1x16x32xbf16, #tpu.memory_space<vmem>>, %arg8: memref<8x4xf32, #tpu.memory_space<vmem>>, %arg9: memref<8x4xf32, #tpu.memory_space<vmem>>, %arg10: memref<1x8x32xf32, #tpu.memory_space<vmem>>, %arg11: memref<8x32xf32, #tpu.memory_space<vmem>>, %arg12: memref<8x8xbf16, #tpu.memory_space<vmem>>, %arg13: memref<8x8xbf16, #tpu.memory_space<vmem>>, %arg14: memref<8x8xbf16, #tpu.memory_space<vmem>>) attributes {dimension_semantics = [#tpu.dimension_semantics<parallel>, #tpu.dimension_semantics<arbitrary>, #tpu.dimension_semantics<arbitrary>], iteration_bounds = array<i64: 2, 2, 1>, scalar_prefetch = 0 : i64, scratch_operands = 4 : i64, tpu.core_type = #tpu.core_type<tc>, window_params = [{transform_indices = @transform_0, window_bounds = array<i64: 1, 8, 32>}, {transform_indices = @transform_1, window_bounds = array<i64: 1, 32, 16>}, {transform_indices = @transform_2, window_bounds = array<i64: 1, 32, 8>}, {transform_indices = @transform_3, window_bounds = array<i64: 1, 32, 8>}, {transform_indices = @transform_4, window_bounds = array<i64: 1, 16, 32>}, {pipeline_mode = #tpu.pipeline_mode<synchronous>, transform_indices = @transform_5, window_bounds = array<i64: 8, 4>}, {pipeline_mode = #tpu.pipeline_mode<synchronous>, transform_indices = @transform_6, window_bounds = array<i64: 8, 4>}, {transform_indices = @transform_7, window_bounds = array<i64: 1, 8, 32>}]} {
    %c0_i32 = arith.constant 0 : i32
    %0 = arith.cmpi eq, %arg1, %c0_i32 : i32
    %c0_i32_0 = arith.constant 0 : i32
    %1 = arith.cmpi eq, %arg2, %c0_i32_0 : i32
    %2 = arith.andi %0, %1 : i1
    %3 = arith.extui %2 : i1 to i32
    %c0_i32_1 = arith.constant 0 : i32
    %4 = arith.cmpi ne, %3, %c0_i32_1 : i32
    scf.if %4 {
      %cst_43 = arith.constant 0.000000e+00 : f32
      %86 = vector.broadcast %cst_43 : f32 to vector<8x32xf32>
      %c0_44 = arith.constant 0 : index
      %c0_45 = arith.constant 0 : index
      %87 = vector.load %arg11[%c0_44, %c0_45] : memref<8x32xf32, #tpu.memory_space<vmem>>, vector<8x32xf32>
      tpu.vector_store %arg11[%c0_44, %c0_45], %86 {strides = array<i32>} : memref<8x32xf32, #tpu.memory_space<vmem>>, vector<8x32xf32>,
    } else {
    }
    %c0_i32_2 = arith.constant 0 : i32
    %5 = arith.cmpi eq, %arg2, %c0_i32_2 : i32
    %6 = arith.extui %5 : i1 to i32
    %c0_i32_3 = arith.constant 0 : i32
    %7 = arith.cmpi ne, %6, %c0_i32_3 : i32
    scf.if %7 {
      %c0_43 = arith.constant 0 : index
      %c0_44 = arith.constant 0 : index
      %c0_45 = arith.constant 0 : index
      %86 = vector.load %arg3[%c0_43, %c0_44, %c0_45] : memref<1x8x32xbf16, #tpu.memory_space<vmem>>, vector<1x8x32xbf16>
      %87 = vector.shape_cast %86 : vector<1x8x32xbf16> to vector<8x32xbf16>
      %c0_46 = arith.constant 0 : index
      %c0_47 = arith.constant 0 : index
      %c0_48 = arith.constant 0 : index
      %88 = vector.load %arg5[%c0_46, %c0_47, %c0_48] : memref<1x32x8xbf16, #tpu.memory_space<vmem>>, vector<1x32x8xbf16>
      %89 = vector.shape_cast %88 : vector<1x32x8xbf16> to vector<32x8xbf16>
      %cst_49 = arith.constant dense<0.000000e+00> : vector<8x8xf32>
      %90 = tpu.matmul %87, %89, %cst_49 {dimension_numbers = #tpu.dot_dimension_numbers<[1], [0], [0], [1], [0, 0, 1, 1], [], []>} : vector<8x32xbf16>, vector<32x8xbf16>, vector<8x8xf32> -> vector<8x8xf32>
      %c0_50 = arith.constant 0 : index
      %c0_51 = arith.constant 0 : index
      %c0_52 = arith.constant 0 : index
      %91 = vector.load %arg6[%c0_50, %c0_51, %c0_52] : memref<1x32x8xbf16, #tpu.memory_space<vmem>>, vector<1x32x8xbf16>
      %92 = vector.shape_cast %91 : vector<1x32x8xbf16> to vector<32x8xbf16>
      %cst_53 = arith.constant dense<0.000000e+00> : vector<8x8xf32>
      %93 = tpu.matmul %87, %92, %cst_53 {dimension_numbers = #tpu.dot_dimension_numbers<[1], [0], [0], [1], [0, 0, 1, 1], [], []>} : vector<8x32xbf16>, vector<32x8xbf16>, vector<8x8xf32> -> vector<8x8xf32>
      %c0_54 = arith.constant 0 : index
      %c0_55 = arith.constant 0 : index
      %94 = vector.load %arg8[%c0_54, %c0_55] : memref<8x4xf32, #tpu.memory_space<vmem>>, vector<8x4xf32>
      %c0_56 = arith.constant 0 : index
      %c0_57 = arith.constant 0 : index
      %95 = vector.load %arg9[%c0_56, %c0_57] : memref<8x4xf32, #tpu.memory_space<vmem>>, vector<8x4xf32>
      %96 = vector.extract_strided_slice %90 {offsets = [0, 0], sizes = [8, 4], strides = [1, 1]} : vector<8x8xf32> to vector<8x4xf32>
      %97 = vector.extract_strided_slice %90 {offsets = [0, 4], sizes = [8, 4], strides = [1, 1]} : vector<8x8xf32> to vector<8x4xf32>
      %98 = arith.mulf %96, %94 : vector<8x4xf32>
      %99 = arith.mulf %97, %95 : vector<8x4xf32>
      %100 = arith.subf %98, %99 : vector<8x4xf32>
      %101 = arith.truncf %100 : vector<8x4xf32> to vector<8x4xbf16>
      %c0_58 = arith.constant 0 : index
      %c0_59 = arith.constant 0 : index
      %102 = vector.load %arg12[%c0_58, %c0_59] : memref<8x8xbf16, #tpu.memory_space<vmem>>, vector<8x4xbf16>
      tpu.vector_store %arg12[%c0_58, %c0_59], %101 {strides = array<i32>} : memref<8x8xbf16, #tpu.memory_space<vmem>>, vector<8x4xbf16>,
      %103 = arith.mulf %97, %94 : vector<8x4xf32>
      %104 = arith.mulf %96, %95 : vector<8x4xf32>
      %105 = arith.addf %103, %104 : vector<8x4xf32>
      %106 = arith.truncf %105 : vector<8x4xf32> to vector<8x4xbf16>
      %c0_60 = arith.constant 0 : index
      %c4_61 = arith.constant 4 : index
      %107 = vector.load %arg12[%c0_60, %c4_61] : memref<8x8xbf16, #tpu.memory_space<vmem>>, vector<8x4xbf16>
      tpu.vector_store %arg12[%c0_60, %c4_61], %106 {strides = array<i32>} : memref<8x8xbf16, #tpu.memory_space<vmem>>, vector<8x4xbf16>,
      %108 = arith.truncf %93 : vector<8x8xf32> to vector<8x8xbf16>
      %c0_62 = arith.constant 0 : index
      %c0_63 = arith.constant 0 : index
      %109 = vector.load %arg13[%c0_62, %c0_63] : memref<8x8xbf16, #tpu.memory_space<vmem>>, vector<8x8xbf16>
      tpu.vector_store %arg13[%c0_62, %c0_63], %108 {strides = array<i32>} : memref<8x8xbf16, #tpu.memory_space<vmem>>, vector<8x8xbf16>,
    } else {
    }
    %c8_i32 = arith.constant 8 : i32
    %8 = arith.muli %arg2, %c8_i32 : i32
    %9 = tpu.assume_multiple %8, 8 : i32
    %c0 = arith.constant 0 : index
    %10 = arith.index_cast %9 : i32 to index
    %c0_4 = arith.constant 0 : index
    %11 = vector.load %arg3[%c0, %10, %c0_4] : memref<1x8x32xbf16, #tpu.memory_space<vmem>>, vector<1x8x32xbf16>
    %12 = vector.shape_cast %11 : vector<1x8x32xbf16> to vector<8x32xbf16>
    %c0_5 = arith.constant 0 : index
    %c0_6 = arith.constant 0 : index
    %c0_7 = arith.constant 0 : index
    %13 = vector.load %arg4[%c0_5, %c0_6, %c0_7] : memref<1x32x16xbf16, #tpu.memory_space<vmem>>, vector<1x32x16xbf16>
    %14 = vector.shape_cast %13 : vector<1x32x16xbf16> to vector<32x16xbf16>
    %cst = arith.constant dense<0.000000e+00> : vector<8x16xf32>
    %15 = tpu.matmul %12, %14, %cst {dimension_numbers = #tpu.dot_dimension_numbers<[1], [0], [0], [1], [0, 0, 1, 1], [], []>} : vector<8x32xbf16>, vector<32x16xbf16>, vector<8x16xf32> -> vector<8x16xf32>
    %16 = arith.index_cast %9 : i32 to index
    %c0_8 = arith.constant 0 : index
    %17 = vector.load %arg8[%16, %c0_8] : memref<8x4xf32, #tpu.memory_space<vmem>>, vector<8x4xf32>
    %18 = arith.index_cast %9 : i32 to index
    %c0_9 = arith.constant 0 : index
    %19 = vector.load %arg9[%18, %c0_9] : memref<8x4xf32, #tpu.memory_space<vmem>>, vector<8x4xf32>
    %20 = tpu.iota {dimensions = array<i32: 0>} : vector<8x8xi32>
    %21 = vector.broadcast %9 : i32 to vector<8x8xi32>
    %22 = arith.addi %21, %20 : vector<8x8xi32>
    %23 = tpu.iota {dimensions = array<i32: 1>} : vector<8x8xi32>
    %24 = arith.cmpi sgt, %23, %22 : vector<8x8xi32>
    %c0_10 = arith.constant 0 : index
    %c0_11 = arith.constant 0 : index
    %25 = vector.load %arg12[%c0_10, %c0_11] : memref<8x8xbf16, #tpu.memory_space<vmem>>, vector<8x8xbf16>
    %c0_12 = arith.constant 0 : index
    %c0_13 = arith.constant 0 : index
    %26 = vector.load %arg13[%c0_12, %c0_13] : memref<8x8xbf16, #tpu.memory_space<vmem>>, vector<8x8xbf16>
    %27 = vector.extract_strided_slice %15 {offsets = [0, 0], sizes = [8, 8], strides = [1, 1]} : vector<8x16xf32> to vector<8x8xf32>
    %28 = vector.extract_strided_slice %27 {offsets = [0, 0], sizes = [8, 4], strides = [1, 1]} : vector<8x8xf32> to vector<8x4xf32>
    %29 = vector.extract_strided_slice %27 {offsets = [0, 4], sizes = [8, 4], strides = [1, 1]} : vector<8x8xf32> to vector<8x4xf32>
    %30 = arith.mulf %28, %17 : vector<8x4xf32>
    %31 = arith.mulf %29, %19 : vector<8x4xf32>
    %32 = arith.subf %30, %31 : vector<8x4xf32>
    %33 = arith.truncf %32 : vector<8x4xf32> to vector<8x4xbf16>
    %c0_14 = arith.constant 0 : index
    %c0_15 = arith.constant 0 : index
    %34 = vector.load %arg14[%c0_14, %c0_15] : memref<8x8xbf16, #tpu.memory_space<vmem>>, vector<8x4xbf16>
    tpu.vector_store %arg14[%c0_14, %c0_15], %33 {strides = array<i32>} : memref<8x8xbf16, #tpu.memory_space<vmem>>, vector<8x4xbf16>,
    %35 = arith.mulf %29, %17 : vector<8x4xf32>
    %36 = arith.mulf %28, %19 : vector<8x4xf32>
    %37 = arith.addf %35, %36 : vector<8x4xf32>
    %38 = arith.truncf %37 : vector<8x4xf32> to vector<8x4xbf16>
    %c0_16 = arith.constant 0 : index
    %c4 = arith.constant 4 : index
    %39 = vector.load %arg14[%c0_16, %c4] : memref<8x8xbf16, #tpu.memory_space<vmem>>, vector<8x4xbf16>
    tpu.vector_store %arg14[%c0_16, %c4], %38 {strides = array<i32>} : memref<8x8xbf16, #tpu.memory_space<vmem>>, vector<8x4xbf16>,
    %c0_17 = arith.constant 0 : index
    %c0_18 = arith.constant 0 : index
    %40 = vector.load %arg14[%c0_17, %c0_18] : memref<8x8xbf16, #tpu.memory_space<vmem>>, vector<8x8xbf16>
    %cst_19 = arith.constant dense<0.000000e+00> : vector<8x8xf32>
    %41 = tpu.matmul %40, %25, %cst_19 {dimension_numbers = #tpu.dot_dimension_numbers<[1], [1], [0], [0], [0, 0, 1, 0], [], []>} : vector<8x8xbf16>, vector<8x8xbf16>, vector<8x8xf32> -> vector<8x8xf32>
    %cst_20 = arith.constant 0xFF800000 : f32
    %42 = vector.broadcast %cst_20 : f32 to vector<8x8xf32>
    %43 = arith.select %24, %42, %41 : vector<8x8xi1>, vector<8x8xf32>
    %44 = arith.truncf %43 : vector<8x8xf32> to vector<8x8xbf16>
    %cst_21 = arith.constant dense<0.000000e+00> : vector<8x8xf32>
    %45 = tpu.matmul %44, %26, %cst_21 {dimension_numbers = #tpu.dot_dimension_numbers<[1], [0], [0], [1], [0, 0, 1, 1], [], []>} : vector<8x8xbf16>, vector<8x8xbf16>, vector<8x8xf32> -> vector<8x8xf32>
    %46 = arith.index_cast %9 : i32 to index
    %c0_22 = arith.constant 0 : index
    %47 = vector.load %arg11[%46, %c0_22] : memref<8x32xf32, #tpu.memory_space<vmem>>, vector<8x32xf32>
    %48 = arith.truncf %45 : vector<8x8xf32> to vector<8x8xbf16>
    %c0_23 = arith.constant 0 : index
    %c0_24 = arith.constant 0 : index
    %c0_25 = arith.constant 0 : index
    %49 = vector.load %arg7[%c0_23, %c0_24, %c0_25] : memref<1x16x32xbf16, #tpu.memory_space<vmem>>, vector<1x8x32xbf16>
    %50 = vector.shape_cast %49 : vector<1x8x32xbf16> to vector<8x32xbf16>
    %cst_26 = arith.constant dense<0.000000e+00> : vector<8x32xf32>
    %51 = tpu.matmul %48, %50, %cst_26 {dimension_numbers = #tpu.dot_dimension_numbers<[1], [0], [0], [1], [0, 0, 1, 1], [], []>} : vector<8x8xbf16>, vector<8x32xbf16>, vector<8x32xf32> -> vector<8x32xf32>
    %52 = arith.addf %47, %51 : vector<8x32xf32>
    %53 = arith.index_cast %9 : i32 to index
    %c0_27 = arith.constant 0 : index
    %54 = vector.load %arg11[%53, %c0_27] : memref<8x32xf32, #tpu.memory_space<vmem>>, vector<8x32xf32>
    tpu.vector_store %arg11[%53, %c0_27], %52 {strides = array<i32>} : memref<8x32xf32, #tpu.memory_space<vmem>>, vector<8x32xf32>,
    %55 = vector.extract_strided_slice %15 {offsets = [0, 8], sizes = [8, 8], strides = [1, 1]} : vector<8x16xf32> to vector<8x8xf32>
    %56 = vector.extract_strided_slice %55 {offsets = [0, 0], sizes = [8, 4], strides = [1, 1]} : vector<8x8xf32> to vector<8x4xf32>
    %57 = vector.extract_strided_slice %55 {offsets = [0, 4], sizes = [8, 4], strides = [1, 1]} : vector<8x8xf32> to vector<8x4xf32>
    %58 = arith.mulf %56, %17 : vector<8x4xf32>
    %59 = arith.mulf %57, %19 : vector<8x4xf32>
    %60 = arith.subf %58, %59 : vector<8x4xf32>
    %61 = arith.truncf %60 : vector<8x4xf32> to vector<8x4xbf16>
    %c0_28 = arith.constant 0 : index
    %c0_29 = arith.constant 0 : index
    %62 = vector.load %arg14[%c0_28, %c0_29] : memref<8x8xbf16, #tpu.memory_space<vmem>>, vector<8x4xbf16>
    tpu.vector_store %arg14[%c0_28, %c0_29], %61 {strides = array<i32>} : memref<8x8xbf16, #tpu.memory_space<vmem>>, vector<8x4xbf16>,
    %63 = arith.mulf %57, %17 : vector<8x4xf32>
    %64 = arith.mulf %56, %19 : vector<8x4xf32>
    %65 = arith.addf %63, %64 : vector<8x4xf32>
    %66 = arith.truncf %65 : vector<8x4xf32> to vector<8x4xbf16>
    %c0_30 = arith.constant 0 : index
    %c4_31 = arith.constant 4 : index
    %67 = vector.load %arg14[%c0_30, %c4_31] : memref<8x8xbf16, #tpu.memory_space<vmem>>, vector<8x4xbf16>
    tpu.vector_store %arg14[%c0_30, %c4_31], %66 {strides = array<i32>} : memref<8x8xbf16, #tpu.memory_space<vmem>>, vector<8x4xbf16>,
    %c0_32 = arith.constant 0 : index
    %c0_33 = arith.constant 0 : index
    %68 = vector.load %arg14[%c0_32, %c0_33] : memref<8x8xbf16, #tpu.memory_space<vmem>>, vector<8x8xbf16>
    %cst_34 = arith.constant dense<0.000000e+00> : vector<8x8xf32>
    %69 = tpu.matmul %68, %25, %cst_34 {dimension_numbers = #tpu.dot_dimension_numbers<[1], [1], [0], [0], [0, 0, 1, 0], [], []>} : vector<8x8xbf16>, vector<8x8xbf16>, vector<8x8xf32> -> vector<8x8xf32>
    %cst_35 = arith.constant 0xFF800000 : f32
    %70 = vector.broadcast %cst_35 : f32 to vector<8x8xf32>
    %71 = arith.select %24, %70, %69 : vector<8x8xi1>, vector<8x8xf32>
    %72 = arith.truncf %71 : vector<8x8xf32> to vector<8x8xbf16>
    %cst_36 = arith.constant dense<0.000000e+00> : vector<8x8xf32>
    %73 = tpu.matmul %72, %26, %cst_36 {dimension_numbers = #tpu.dot_dimension_numbers<[1], [0], [0], [1], [0, 0, 1, 1], [], []>} : vector<8x8xbf16>, vector<8x8xbf16>, vector<8x8xf32> -> vector<8x8xf32>
    %74 = arith.index_cast %9 : i32 to index
    %c0_37 = arith.constant 0 : index
    %75 = vector.load %arg11[%74, %c0_37] : memref<8x32xf32, #tpu.memory_space<vmem>>, vector<8x32xf32>
    %76 = arith.truncf %73 : vector<8x8xf32> to vector<8x8xbf16>
    %c0_38 = arith.constant 0 : index
    %c8 = arith.constant 8 : index
    %c0_39 = arith.constant 0 : index
    %77 = vector.load %arg7[%c0_38, %c8, %c0_39] : memref<1x16x32xbf16, #tpu.memory_space<vmem>>, vector<1x8x32xbf16>
    %78 = vector.shape_cast %77 : vector<1x8x32xbf16> to vector<8x32xbf16>
    %cst_40 = arith.constant dense<0.000000e+00> : vector<8x32xf32>
    %79 = tpu.matmul %76, %78, %cst_40 {dimension_numbers = #tpu.dot_dimension_numbers<[1], [0], [0], [1], [0, 0, 1, 1], [], []>} : vector<8x8xbf16>, vector<8x32xbf16>, vector<8x32xf32> -> vector<8x32xf32>
    %80 = arith.addf %75, %79 : vector<8x32xf32>
    %81 = arith.index_cast %9 : i32 to index
    %c0_41 = arith.constant 0 : index
    %82 = vector.load %arg11[%81, %c0_41] : memref<8x32xf32, #tpu.memory_space<vmem>>, vector<8x32xf32>
    tpu.vector_store %arg11[%81, %c0_41], %80 {strides = array<i32>} : memref<8x32xf32, #tpu.memory_space<vmem>>, vector<8x32xf32>,
    %c1_i32 = arith.constant 1 : i32
    %83 = arith.cmpi eq, %arg1, %c1_i32 : i32
    %84 = arith.extui %83 : i1 to i32
    %c0_i32_42 = arith.constant 0 : i32
    %85 = arith.cmpi ne, %84, %c0_i32_42 : i32
    scf.if %85 {
      %86 = arith.index_cast %9 : i32 to index
      %c0_43 = arith.constant 0 : index
      %87 = vector.load %arg11[%86, %c0_43] : memref<8x32xf32, #tpu.memory_space<vmem>>, vector<8x32xf32>
      %c0_44 = arith.constant 0 : index
      %88 = arith.index_cast %9 : i32 to index
      %c0_45 = arith.constant 0 : index
      %89 = vector.load %arg10[%c0_44, %88, %c0_45] : memref<1x8x32xf32, #tpu.memory_space<vmem>>, vector<1x8x32xf32>
      %90 = vector.shape_cast %89 : vector<1x8x32xf32> to vector<8x32xf32>
      %91 = vector.shape_cast %87 : vector<8x32xf32> to vector<1x8x32xf32>
      tpu.vector_store %arg10[%c0_44, %88, %c0_45], %91 {strides = array<i32>} : memref<1x8x32xf32, #tpu.memory_space<vmem>>, vector<1x8x32xf32>,
    } else {
    }
    return
  }
  func.func @transform_0(%arg0: i32, %arg1: i32, %arg2: i32) -> (i32, i32, i32) {
    %c0_i32 = arith.constant 0 : i32
    %c0_i32_0 = arith.constant 0 : i32
    %c0_i32_1 = arith.constant 0 : i32
    return %arg0, %c0_i32, %c0_i32_0 : i32, i32, i32
  }
  func.func @transform_1(%arg0: i32, %arg1: i32, %arg2: i32) -> (i32, i32, i32) {
    %c0_i32 = arith.constant 0 : i32
    %c0_i32_0 = arith.constant 0 : i32
    %c0_i32_1 = arith.constant 0 : i32
    return %arg1, %c0_i32, %c0_i32_0 : i32, i32, i32
  }
  func.func @transform_2(%arg0: i32, %arg1: i32, %arg2: i32) -> (i32, i32, i32) {
    %c0_i32 = arith.constant 0 : i32
    %c0_i32_0 = arith.constant 0 : i32
    %c0_i32_1 = arith.constant 0 : i32
    return %arg1, %c0_i32, %c0_i32_0 : i32, i32, i32
  }
  func.func @transform_3(%arg0: i32, %arg1: i32, %arg2: i32) -> (i32, i32, i32) {
    %c0_i32 = arith.constant 0 : i32
    %c0_i32_0 = arith.constant 0 : i32
    %c0_i32_1 = arith.constant 0 : i32
    return %arg1, %c0_i32, %c0_i32_0 : i32, i32, i32
  }
  func.func @transform_4(%arg0: i32, %arg1: i32, %arg2: i32) -> (i32, i32, i32) {
    %c0_i32 = arith.constant 0 : i32
    %c0_i32_0 = arith.constant 0 : i32
    %c0_i32_1 = arith.constant 0 : i32
    return %arg1, %c0_i32, %c0_i32_0 : i32, i32, i32
  }
  func.func @transform_5(%arg0: i32, %arg1: i32, %arg2: i32) -> (i32, i32) {
    %c0_i32 = arith.constant 0 : i32
    %c0_i32_0 = arith.constant 0 : i32
    %c0_i32_1 = arith.constant 0 : i32
    return %c0_i32, %c0_i32_0 : i32, i32
  }
  func.func @transform_6(%arg0: i32, %arg1: i32, %arg2: i32) -> (i32, i32) {
    %c0_i32 = arith.constant 0 : i32
    %c0_i32_0 = arith.constant 0 : i32
    %c0_i32_1 = arith.constant 0 : i32
    return %c0_i32, %c0_i32_0 : i32, i32
  }
  func.func @transform_7(%arg0: i32, %arg1: i32, %arg2: i32) -> (i32, i32, i32) {
    %c0_i32 = arith.constant 0 : i32
    %c0_i32_0 = arith.constant 0 : i32
    %c0_i32_1 = arith.constant 0 : i32
    return %arg0, %c0_i32, %c0_i32_0 : i32, i32, i32
  }
}

</mosaic_0001>

<llo_original>
// kernel: tpu_custom_call.1
$region0: #{tpu_custom_call.1}
  #allocation0 [shape = 'u32[]', space=smem, size = 0x4, offset = 0x4, fixed_abs, tag = 'smem constant byte address 0x4 - core index']
  #allocation1 [shape = 'u32[144,128]{1,0:T(1,128)}', space=vmem, size = 0x12000, scoped, tag = 'internal scratch']
  #allocation2 [shape = 'f32[8,32]{1,0:T(8,128)}', space=vmem, size = 0x1000, scoped, tag = 'scratch operand']
  #allocation3 [shape = 'bf16[8,8]{1,0:T(8,128)(2,1)}', space=vmem, size = 0x800, scoped, tag = 'scratch operand']
  #allocation4 [shape = 'bf16[8,8]{1,0:T(8,128)(2,1)}', space=vmem, size = 0x800, scoped, tag = 'scratch operand']
  #allocation5 [shape = 'bf16[8,8]{1,0:T(8,128)(2,1)}', space=vmem, size = 0x800, scoped, tag = 'scratch operand']
  %s0 = inlined_call_operand.vmem [shape: bf16[2,8,32], index: 0, kind: input, shape index: {}]
  %s1 = inlined_call_operand.vmem [shape: bf16[2,32,16], index: 1, kind: input, shape index: {}]
  %s2 = inlined_call_operand.vmem [shape: bf16[2,32,8], index: 2, kind: input, shape index: {}]
  %s3 = inlined_call_operand.vmem [shape: bf16[2,32,8], index: 3, kind: input, shape index: {}]
  %s4 = inlined_call_operand.vmem [shape: bf16[2,16,32], index: 4, kind: input, shape index: {}]
  %s5 = inlined_call_operand.vmem [shape: f32[8,4], index: 5, kind: input, shape index: {}]
  %s6 = inlined_call_operand.vmem [shape: f32[8,4], index: 6, kind: input, shape index: {}]
  %s7 = inlined_call_operand.hbm [shape: f32[2,8,32], index: 7, kind: output, shape index: {}]
  %s8 = sld [smem:[#allocation0]]
  $region73: #{tpu_custom_call.1} parent=0
    _
  %s10 = ssub.s32 1, %s8
  %s11 = scalar_select 0, %s10, %s8
  $region1: #{tpu_custom_call.1} parent=0
    #allocation6 [shape = 'u8[8192]{0}', space=vmem, size = 0x2000, scoped, tag = 'output window, operand 0']
    #allocation7 [shape = 's32[2]{0}', space=sflag, size = 0x8, scoped, tag = 'scoped memory for tpu_custom_call.1']
    %12 = vsyncpa [#allocation7], 0
    %s13 = scalar_lea.sflag [#allocation7], 1
    %14 = vsyncpa %s13, 0
    loop: start=0, step=1, limit=6
    $region2: #{tpu_custom_call.1} parent=1 // loop_pre_header
      _
    $region3: #{tpu_custom_call.1} parent=1 // loop_header
      %s16 = sphi 0, %s20
      %p17 = scmp.ge.s32.totalorder %s16, 6
      %s23 = sphi 0, %s42
      %s24 = sphi 0, %s38
      %s25 = sphi 0, %s34
      %s26 = sphi 0, %s23
      %s27 = sphi 0, %s24
      %s28 = sphi 0, %s25
      %s29 = sphi 0, %s26
      %s30 = sphi 0, %s27
      %s31 = sphi 0, %s28
      %s45 = sphi 0, %s47
      %s48 = sphi 0, %s45
      %s49 = sphi 0, %s48
      %s65 = sphi 0, %s49
      %s71 = sphi 0, %s73
      %s74 = sphi 0, %s71
      %s75 = sphi 0, %s74
      %s91 = sphi 0, %s75
      %s97 = sphi 0, %s99
      %s100 = sphi 0, %s97
      %s101 = sphi 0, %s100
      %s117 = sphi 0, %s101
      %s123 = sphi 0, %s125
      %s126 = sphi 0, %s123
      %s127 = sphi 0, %s126
      %s143 = sphi 0, %s127
      %s149 = sphi 0, %s151
      %s152 = sphi 0, %s149
      %s153 = sphi 0, %s152
      %s169 = sphi 0, %s153
      %s173 = sphi 0, %s173
      %s175 = sphi 0, %s173
      %s176 = sphi 0, %s175
      %s190 = sphi 0, %s176
      %s194 = sphi 0, %s194
      %s196 = sphi 0, %s194
      %s197 = sphi 0, %s196
      %s211 = sphi 0, %s197
      %s217 = sphi 0, %s219
      %s220 = sphi 0, %s217
      %s221 = sphi 0, %s220
      %s237 = sphi 0, %s221
    $region4: #{tpu_custom_call.1} parent=1 // loop_header_branch
      %19 = sbr.rel (%p17) target = $region8
    $region5: #{tpu_custom_call.1} parent=1 // loop_body
      %s21 = ssub.s32 %s16, 1
      %s22 = ssub.s32 %s16, 2
      %s32 = sadd.s32 1, %s25
      %p33 = scmp.ge.s32.totalorder %s32, 1
      %s34 = scalar_select %p33, 0, %s32
      %s35 = sadd.s32 1, %s24
      %s36 = scalar_select %p33, %s35, %s24
      %p37 = scmp.ge.s32.totalorder %s36, 2
      %s38 = scalar_select %p37, 0, %s36
      %s39 = sadd.s32 1, %s23
      %s40 = scalar_select %p37, %s39, %s23
      %p41 = scmp.ge.s32.totalorder %s40, 2
      %s42 = scalar_select %p41, 0, %s40
      %s43 = ssub.s32 %s23, %s42
      %p44 = scmp.eq.s32.totalorder %s43, 0
      %s46 = sadd.s32 %s45, 1
      %s47 = scalar_select %p44, %s45, %s46
      %p50 = pneg %p44
      %p51 = scmp.eq.s32.totalorder %s16, 3
      %p52 = por %p50, %p51
      %p53 = scmp.ne.s32.totalorder %s45, %s48
      %p54 = scmp.eq.s32.totalorder %s16, 0
      %p55 = por %p53, %p54
      %p56 = scmp.ne.s32.totalorder %s45, %s48
      %p57 = scmp.eq.s32.totalorder %s21, 3
      %p58 = por %p56, %p57
      %p59 = scmp.ne.s32.totalorder %s48, %s49
      %p60 = scmp.eq.s32.totalorder %s21, 0
      %p61 = por %p59, %p60
      %p62 = scmp.ne.s32.totalorder %s48, %s49
      %p63 = scmp.eq.s32.totalorder %s22, 3
      %p64 = por %p62, %p63
      %p66 = scmp.ne.s32.totalorder %s49, %s65
      %p67 = scmp.eq.s32.totalorder %s22, 0
      %p68 = por %p66, %p67
      %s69 = ssub.s32 %s24, %s38
      %p70 = scmp.eq.s32.totalorder %s69, 0
      %s72 = sadd.s32 %s71, 1
      %s73 = scalar_select %p70, %s71, %s72
      %p76 = pneg %p70
      %p77 = scmp.eq.s32.totalorder %s16, 3
      %p78 = por %p76, %p77
      %p79 = scmp.ne.s32.totalorder %s71, %s74
      %p80 = scmp.eq.s32.totalorder %s16, 0
      %p81 = por %p79, %p80
      %p82 = scmp.ne.s32.totalorder %s71, %s74
      %p83 = scmp.eq.s32.totalorder %s21, 3
      %p84 = por %p82, %p83
      %p85 = scmp.ne.s32.totalorder %s74, %s75
      %p86 = scmp.eq.s32.totalorder %s21, 0
      %p87 = por %p85, %p86
      %p88 = scmp.ne.s32.totalorder %s74, %s75
      %p89 = scmp.eq.s32.totalorder %s22, 3
      %p90 = por %p88, %p89
      %p92 = scmp.ne.s32.totalorder %s75, %s91
      %p93 = scmp.eq.s32.totalorder %s22, 0
      %p94 = por %p92, %p93
      %s95 = ssub.s32 %s24, %s38
      %p96 = scmp.eq.s32.totalorder %s95, 0
      %s98 = sadd.s32 %s97, 1
      %s99 = scalar_select %p96, %s97, %s98
      %p102 = pneg %p96
      %p103 = scmp.eq.s32.totalorder %s16, 3
      %p104 = por %p102, %p103
      %p105 = scmp.ne.s32.totalorder %s97, %s100
      %p106 = scmp.eq.s32.totalorder %s16, 0
      %p107 = por %p105, %p106
      %p108 = scmp.ne.s32.totalorder %s97, %s100
      %p109 = scmp.eq.s32.totalorder %s21, 3
      %p110 = por %p108, %p109
      %p111 = scmp.ne.s32.totalorder %s100, %s101
      %p112 = scmp.eq.s32.totalorder %s21, 0
      %p113 = por %p111, %p112
      %p114 = scmp.ne.s32.totalorder %s100, %s101
      %p115 = scmp.eq.s32.totalorder %s22, 3
      %p116 = por %p114, %p115
      %p118 = scmp.ne.s32.totalorder %s101, %s117
      %p119 = scmp.eq.s32.totalorder %s22, 0
      %p120 = por %p118, %p119
      %s121 = ssub.s32 %s24, %s38
      %p122 = scmp.eq.s32.totalorder %s121, 0
      %s124 = sadd.s32 %s123, 1
      %s125 = scalar_select %p122, %s123, %s124
      %p128 = pneg %p122
      %p129 = scmp.eq.s32.totalorder %s16, 3
      %p130 = por %p128, %p129
      %p131 = scmp.ne.s32.totalorder %s123, %s126
      %p132 = scmp.eq.s32.totalorder %s16, 0
      %p133 = por %p131, %p132
      %p134 = scmp.ne.s32.totalorder %s123, %s126
      %p135 = scmp.eq.s32.totalorder %s21, 3
      %p136 = por %p134, %p135
      %p137 = scmp.ne.s32.totalorder %s126, %s127
      %p138 = scmp.eq.s32.totalorder %s21, 0
      %p139 = por %p137, %p138
      %p140 = scmp.ne.s32.totalorder %s126, %s127
      %p141 = scmp.eq.s32.totalorder %s22, 3
      %p142 = por %p140, %p141
      %p144 = scmp.ne.s32.totalorder %s127, %s143
      %p145 = scmp.eq.s32.totalorder %s22, 0
      %p146 = por %p144, %p145
      %s147 = ssub.s32 %s24, %s38
      %p148 = scmp.eq.s32.totalorder %s147, 0
      %s150 = sadd.s32 %s149, 1
      %s151 = scalar_select %p148, %s149, %s150
      %p154 = pneg %p148
      %p155 = scmp.eq.s32.totalorder %s16, 3
      %p156 = por %p154, %p155
      %p157 = scmp.ne.s32.totalorder %s149, %s152
      %p158 = scmp.eq.s32.totalorder %s16, 0
      %p159 = por %p157, %p158
      %p160 = scmp.ne.s32.totalorder %s149, %s152
      %p161 = scmp.eq.s32.totalorder %s21, 3
      %p162 = por %p160, %p161
      %p163 = scmp.ne.s32.totalorder %s152, %s153
      %p164 = scmp.eq.s32.totalorder %s21, 0
      %p165 = por %p163, %p164
      %p166 = scmp.ne.s32.totalorder %s152, %s153
      %p167 = scmp.eq.s32.totalorder %s22, 3
      %p168 = por %p166, %p167
      %p170 = scmp.ne.s32.totalorder %s153, %s169
      %p171 = scmp.eq.s32.totalorder %s22, 0
      %p172 = por %p170, %p171
      %s174 = sadd.s32 %s173, 1
      %p177 = scmp.eq.s32.totalorder %s16, 3
      %p178 = scmp.ne.s32.totalorder %s173, %s175
      %p179 = scmp.eq.s32.totalorder %s16, 0
      %p180 = por %p178, %p179
      %p181 = scmp.ne.s32.totalorder %s173, %s175
      %p182 = scmp.eq.s32.totalorder %s21, 3
      %p183 = por %p181, %p182
      %p184 = scmp.ne.s32.totalorder %s175, %s176
      %p185 = scmp.eq.s32.totalorder %s21, 0
      %p186 = por %p184, %p185
      %p187 = scmp.ne.s32.totalorder %s175, %s176
      %p188 = scmp.eq.s32.totalorder %s22, 3
      %p189 = por %p187, %p188
      %p191 = scmp.ne.s32.totalorder %s176, %s190
      %p192 = scmp.eq.s32.totalorder %s22, 0
      %p193 = por %p191, %p192
      %s195 = sadd.s32 %s194, 1
      %p198 = scmp.eq.s32.totalorder %s16, 3
      %p199 = scmp.ne.s32.totalorder %s194, %s196
      %p200 = scmp.eq.s32.totalorder %s16, 0
      %p201 = por %p199, %p200
      %p202 = scmp.ne.s32.totalorder %s194, %s196
      %p203 = scmp.eq.s32.totalorder %s21, 3
      %p204 = por %p202, %p203
      %p205 = scmp.ne.s32.totalorder %s196, %s197
      %p206 = scmp.eq.s32.totalorder %s21, 0
      %p207 = por %p205, %p206
      %p208 = scmp.ne.s32.totalorder %s196, %s197
      %p209 = scmp.eq.s32.totalorder %s22, 3
      %p210 = por %p208, %p209
      %p212 = scmp.ne.s32.totalorder %s197, %s211
      %p213 = scmp.eq.s32.totalorder %s22, 0
      %p214 = por %p212, %p213
      %s215 = ssub.s32 %s23, %s42
      %p216 = scmp.eq.s32.totalorder %s215, 0
      %s218 = sadd.s32 %s217, 1
      %s219 = scalar_select %p216, %s217, %s218
      %p222 = pneg %p216
      %p223 = scmp.eq.s32.totalorder %s16, 3
      %p224 = por %p222, %p223
      %p225 = scmp.ne.s32.totalorder %s217, %s220
      %p226 = scmp.eq.s32.totalorder %s16, 0
      %p227 = por %p225, %p226
      %p228 = scmp.ne.s32.totalorder %s217, %s220
      %p229 = scmp.eq.s32.totalorder %s21, 3
      %p230 = por %p228, %p229
      %p231 = scmp.ne.s32.totalorder %s220, %s221
      %p232 = scmp.eq.s32.totalorder %s21, 0
      %p233 = por %p231, %p232
      %p234 = scmp.ne.s32.totalorder %s220, %s221
      %p235 = scmp.eq.s32.totalorder %s22, 3
      %p236 = por %p234, %p235
      %p238 = scmp.ne.s32.totalorder %s221, %s237
      %p239 = scmp.eq.s32.totalorder %s22, 0
      %p240 = por %p238, %p239
      %p241 = scmp.le.s32.totalorder 1, %s16
      %p242 = scmp.lt.s32.totalorder %s16, 5
      %p243 = pnand %p241, %p242
      %p244 = pneg %p243
      // Predicated region
      $region9: #{tpu_custom_call.1} parent=5 // pred_check
        _
      $region10: #{tpu_custom_call.1} parent=5 // pred_check_branch
        %246 = sbr.rel (%p243) target = $region12
      $region11: #{tpu_custom_call.1} parent=5 // pred_region
        %s247 = ssub.s32 %s16, 1
        // Predicated region
        $region13: #{tpu_custom_call.1} parent=11 // pred_check
          %p248 = pneg %p186
        $region14: #{tpu_custom_call.1} parent=11 // pred_check_branch
          %250 = sbr.rel (%p248) target = $region16
        $region15: #{tpu_custom_call.1} parent=11 // pred_region
          _
        $region16: #{tpu_custom_call.1} parent=11 // pred_fallthru
          _
        // Predicated region
        $region17: #{tpu_custom_call.1} parent=11 // pred_check
          %p251 = pneg %p207
        $region18: #{tpu_custom_call.1} parent=11 // pred_check_branch
          %253 = sbr.rel (%p251) target = $region20
        $region19: #{tpu_custom_call.1} parent=11 // pred_region
          _
        $region20: #{tpu_custom_call.1} parent=11 // pred_fallthru
          _
      $region12: #{tpu_custom_call.1} parent=5 // pred_fallthru
        _
      %p254 = scmp.lt.s32.totalorder %s16, 4
      // Predicated region
      $region21: #{tpu_custom_call.1} parent=5 // pred_check
        %p255 = pneg %p254
      $region22: #{tpu_custom_call.1} parent=5 // pred_check_branch
        %257 = sbr.rel (%p255) target = $region24
      $region23: #{tpu_custom_call.1} parent=5 // pred_region
        // Predicated region
        $region25: #{tpu_custom_call.1} parent=23 // pred_check
          %p258 = pneg %p55
        $region26: #{tpu_custom_call.1} parent=23 // pred_check_branch
          %260 = sbr.rel (%p258) target = $region28
        $region27: #{tpu_custom_call.1} parent=23 // pred_region
          %p261 = scmp.lt.s32.totalorder %s23, 1
          %s262 = scalar_select %p261, %s23, 1
          %s263 = smul.addr %s262, 4
          %s264 = scalar_lea.vmem %s0, %s263
        $region28: #{tpu_custom_call.1} parent=23 // pred_fallthru
          _
        // Predicated region
        $region29: #{tpu_custom_call.1} parent=23 // pred_check
          %p265 = pneg %p81
        $region30: #{tpu_custom_call.1} parent=23 // pred_check_branch
          %267 = sbr.rel (%p265) target = $region32
        $region31: #{tpu_custom_call.1} parent=23 // pred_region
          %p268 = scmp.lt.s32.totalorder %s24, 1
          %s269 = scalar_select %p268, %s24, 1
          %s270 = smul.addr %s269, 4
          %s271 = smul.addr %s270, 4
          %s272 = scalar_lea.vmem %s1, %s271
        $region32: #{tpu_custom_call.1} parent=23 // pred_fallthru
          _
        // Predicated region
        $region33: #{tpu_custom_call.1} parent=23 // pred_check
          %p273 = pneg %p107
        $region34: #{tpu_custom_call.1} parent=23 // pred_check_branch
          %275 = sbr.rel (%p273) target = $region36
        $region35: #{tpu_custom_call.1} parent=23 // pred_region
          %p276 = scmp.lt.s32.totalorder %s24, 1
          %s277 = scalar_select %p276, %s24, 1
          %s278 = smul.addr %s277, 4
          %s279 = smul.addr %s278, 4
          %s280 = scalar_lea.vmem %s2, %s279
        $region36: #{tpu_custom_call.1} parent=23 // pred_fallthru
          _
        // Predicated region
        $region37: #{tpu_custom_call.1} parent=23 // pred_check
          %p281 = pneg %p133
        $region38: #{tpu_custom_call.1} parent=23 // pred_check_branch
          %283 = sbr.rel (%p281) target = $region40
        $region39: #{tpu_custom_call.1} parent=23 // pred_region
          %p284 = scmp.lt.s32.totalorder %s24, 1
          %s285 = scalar_select %p284, %s24, 1
          %s286 = smul.addr %s285, 4
          %s287 = smul.addr %s286, 4
          %s288 = scalar_lea.vmem %s3, %s287
        $region40: #{tpu_custom_call.1} parent=23 // pred_fallthru
          _
        // Predicated region
        $region41: #{tpu_custom_call.1} parent=23 // pred_check
          %p289 = pneg %p159
        $region42: #{tpu_custom_call.1} parent=23 // pred_check_branch
          %291 = sbr.rel (%p289) target = $region44
        $region43: #{tpu_custom_call.1} parent=23 // pred_region
          %p292 = scmp.lt.s32.totalorder %s24, 1
          %s293 = scalar_select %p292, %s24, 1
          %s294 = smul.addr %s293, 2
          %s295 = smul.addr %s294, 4
          %s296 = scalar_lea.vmem %s4, %s295
        $region44: #{tpu_custom_call.1} parent=23 // pred_fallthru
          _
      $region24: #{tpu_custom_call.1} parent=5 // pred_fallthru
        _
      %p297 = scmp.le.s32.totalorder 1, %s16
      %p298 = scmp.lt.s32.totalorder %s16, 5
      %p299 = pnand %p297, %p298
      %p300 = pneg %p299
      // Predicated region
      $region45: #{tpu_custom_call.1} parent=5 // pred_check
        _
      $region46: #{tpu_custom_call.1} parent=5 // pred_check_branch
        %302 = sbr.rel (%p299) target = $region48
      $region47: #{tpu_custom_call.1} parent=5 // pred_region
        %s303 = ssub.s32 %s16, 1
        %p304 = scmp.lt.s32.totalorder %s26, 1
        %s305 = scalar_select %p304, %s26, 1
        %s306 = smul.addr %s305, 4
        %s307 = scalar_lea.vmem %s0, %s306
        %p308 = pneg %p61
        %p309 = pneg %p58
        %p310 = scmp.lt.s32.totalorder %s27, 1
        %s311 = scalar_select %p310, %s27, 1
        %s312 = smul.addr %s311, 4
        %s313 = smul.addr %s312, 4
        %s314 = scalar_lea.vmem %s1, %s313
        %p315 = pneg %p87
        %p316 = pneg %p84
        %p317 = scmp.lt.s32.totalorder %s27, 1
        %s318 = scalar_select %p317, %s27, 1
        %s319 = smul.addr %s318, 4
        %s320 = smul.addr %s319, 4
        %s321 = scalar_lea.vmem %s2, %s320
        %p322 = pneg %p113
        %p323 = pneg %p110
        %p324 = scmp.lt.s32.totalorder %s27, 1
        %s325 = scalar_select %p324, %s27, 1
        %s326 = smul.addr %s325, 4
        %s327 = smul.addr %s326, 4
        %s328 = scalar_lea.vmem %s3, %s327
        %p329 = pneg %p139
        %p330 = pneg %p136
        %p331 = scmp.lt.s32.totalorder %s27, 1
        %s332 = scalar_select %p331, %s27, 1
        %s333 = smul.addr %s332, 2
        %s334 = smul.addr %s333, 4
        %s335 = scalar_lea.vmem %s4, %s334
        %p336 = pneg %p165
        %p337 = pneg %p162
        %p338 = pneg %p186
        %p339 = pneg %p183
        %p340 = pneg %p207
        %p341 = pneg %p204
        %p342 = pneg %p233
        %p343 = pneg %p230
        %s344 = sand.u32 %s220, 1
        %s345 = scalar_lea.sflag [#allocation7], %s344
        %s346 = sand.u32 %s220, 1
        %s347 = smul.addr %s346, 8
        %s348 = scalar_lea.vmem [#allocation6], %s347
        %p349 = scmp.lt.s32.totalorder %s26, 1
        %s350 = scalar_select %p349, %s26, 1
        %s351 = smul.addr %s350, 4
        %s352 = scalar_lea.vmem %s0, %s351
        %p353 = scmp.lt.s32.totalorder %s27, 1
        %s354 = scalar_select %p353, %s27, 1
        %s355 = smul.addr %s354, 4
        %s356 = smul.addr %s355, 4
        %s357 = scalar_lea.vmem %s1, %s356
        %p358 = scmp.lt.s32.totalorder %s27, 1
        %s359 = scalar_select %p358, %s27, 1
        %s360 = smul.addr %s359, 4
        %s361 = smul.addr %s360, 4
        %s362 = scalar_lea.vmem %s2, %s361
        %p363 = scmp.lt.s32.totalorder %s27, 1
        %s364 = scalar_select %p363, %s27, 1
        %s365 = smul.addr %s364, 4
        %s366 = smul.addr %s365, 4
        %s367 = scalar_lea.vmem %s3, %s366
        %p368 = scmp.lt.s32.totalorder %s27, 1
        %s369 = scalar_select %p368, %s27, 1
        %s370 = smul.addr %s369, 2
        %s371 = smul.addr %s370, 4
        %s372 = scalar_lea.vmem %s4, %s371
        %p374 = scmp.eq.s32.totalorder %s27, 0
        %p375 = scmp.eq.s32.totalorder %s28, 0
        %p376 = pnand %p374, %p375
        %p377 = pneg %p376
        // Predicated region
        $region49: #{tpu_custom_call.1} parent=47 // pred_check
          _
        $region50: #{tpu_custom_call.1} parent=47 // pred_check_branch
          %379 = sbr.rel (%p376) target = $region52
        $region51: #{tpu_custom_call.1} parent=47 // pred_region
          %vm380 = vcmask 261120
          %381 = vst.msk [vmem:[#allocation2] sm:$0xff] %vm380, 0.0
        $region52: #{tpu_custom_call.1} parent=47 // pred_fallthru
          _
        // Predicated region
        $region53: #{tpu_custom_call.1} parent=47 // pred_check
          %p382 = pneg %p375
        $region54: #{tpu_custom_call.1} parent=47 // pred_check_branch
          %384 = sbr.rel (%p382) target = $region56
        $region55: #{tpu_custom_call.1} parent=47 // pred_region
          %v385 = vld [vmem:[%s352] sm:$0xf]
          %v386 = vld [vmem:[%s362] sm:$0xf]
          %v387 = vld [vmem:[%s362 + $0x4] sm:$0xf]
          %v388 = vld [vmem:[%s362 + $0x8] sm:$0xf]
          %v389 = vld [vmem:[%s362 + $0xc] sm:$0xf]
          %v394 = vunpack.c.l.b16 %v386
          %v395 = vunpack.c.l.b16 %v387
          %v396 = vunpack.c.l.b16 %v388
          %v397 = vunpack.c.l.b16 %v389
          %v398 = vpack.c.b16 %v395, %v394
          %v399 = vpack.c.b16 %v397, %v396
          %vm402 = vcmask 261120
          %v404 = vsel %vm402, %v385, 0
          %406 = vmatprep.subr.bf16.mxu0 0
          %407 = vmatpush1.bf16.msra.mxu0 %v398
          %408 = vmatprep.subr.bf16.mxu0 0
          %409 = vmatpush1.bf16.msra.mxu0 %v399
          %410 = vmatprep.subr.bf16.mxu0 0
          %411 = vmatpush1.bf16.msra.mxu0 0
          %412 = vmatprep.subr.bf16.mxu0 0
          %413 = vmatpush1.bf16.msra.mxu0 0
          %414 = vmatprep.subr.bf16.mxu0 0
          %415 = vmatpush1.bf16.msra.mxu0 0
          %416 = vmatprep.subr.bf16.mxu0 0
          %417 = vmatpush1.bf16.msra.mxu0 0
          %418 = vmatprep.subr.bf16.mxu0 0
          %419 = vmatpush1.bf16.msra.mxu0 0
          %420 = vmatprep.subr.bf16.mxu0 0
          %421 = vmatpush1.bf16.msra.mxu0 0
          %422 = vmatprep.subr.bf16.mxu0 0
          %423 = vmatpush1.bf16.msra.mxu0 0
          %424 = vmatprep.subr.bf16.mxu0 0
          %425 = vmatpush1.bf16.msra.mxu0 0
          %426 = vmatprep.subr.bf16.mxu0 0
          %427 = vmatpush1.bf16.msra.mxu0 0
          %428 = vmatprep.subr.bf16.mxu0 0
          %429 = vmatpush1.bf16.msra.mxu0 0
          %430 = vmatprep.subr.bf16.mxu0 0
          %431 = vmatpush1.bf16.msra.mxu0 0
          %432 = vmatprep.subr.bf16.mxu0 0
          %433 = vmatpush1.bf16.msra.mxu0 0
          %434 = vmatprep.subr.bf16.mxu0 0
          %435 = vmatpush1.bf16.msra.mxu0 0
          %436 = vmatprep.subr.bf16.mxu0 0
          %437 = vmatpush1.bf16.msra.mxu0 0
          %438 = vmatprep.mubr.bf16.mxu0 0
          %439 = vmatmul.mubr.bf16.gmra.mrb[0].mxu0 %v404
          %v440 = vpop.f32.mrb[0].mxu0
          %v441 = vadd.f32 0.0, %v440
          %v442 = vpop.f32.mrb[0].mxu0
          %v443 = vpop.f32.mrb[0].mxu0
          %v444 = vpop.f32.mrb[0].mxu0
          %445 = vdwg.mxu0
          %v446 = vld [vmem:[%s367] sm:$0xf]
          %v447 = vld [vmem:[%s367 + $0x4] sm:$0xf]
          %v448 = vld [vmem:[%s367 + $0x8] sm:$0xf]
          %v449 = vld [vmem:[%s367 + $0xc] sm:$0xf]
          %v454 = vunpack.c.l.b16 %v446
          %v455 = vunpack.c.l.b16 %v447
          %v456 = vunpack.c.l.b16 %v448
          %v457 = vunpack.c.l.b16 %v449
          %v458 = vpack.c.b16 %v455, %v454
          %v459 = vpack.c.b16 %v457, %v456
          %462 = vmatprep.subr.bf16.mxu0 0
          %463 = vmatpush1.bf16.msra.mxu0 %v458
          %464 = vmatprep.subr.bf16.mxu0 0
          %465 = vmatpush1.bf16.msra.mxu0 %v459
          %466 = vmatprep.subr.bf16.mxu0 0
          %467 = vmatpush1.bf16.msra.mxu0 0
          %468 = vmatprep.subr.bf16.mxu0 0
          %469 = vmatpush1.bf16.msra.mxu0 0
          %470 = vmatprep.subr.bf16.mxu0 0
          %471 = vmatpush1.bf16.msra.mxu0 0
          %472 = vmatprep.subr.bf16.mxu0 0
          %473 = vmatpush1.bf16.msra.mxu0 0
          %474 = vmatprep.subr.bf16.mxu0 0
          %475 = vmatpush1.bf16.msra.mxu0 0
          %476 = vmatprep.subr.bf16.mxu0 0
          %477 = vmatpush1.bf16.msra.mxu0 0
          %478 = vmatprep.subr.bf16.mxu0 0
          %479 = vmatpush1.bf16.msra.mxu0 0
          %480 = vmatprep.subr.bf16.mxu0 0
          %481 = vmatpush1.bf16.msra.mxu0 0
          %482 = vmatprep.subr.bf16.mxu0 0
          %483 = vmatpush1.bf16.msra.mxu0 0
          %484 = vmatprep.subr.bf16.mxu0 0
          %485 = vmatpush1.bf16.msra.mxu0 0
          %486 = vmatprep.subr.bf16.mxu0 0
          %487 = vmatpush1.bf16.msra.mxu0 0
          %488 = vmatprep.subr.bf16.mxu0 0
          %489 = vmatpush1.bf16.msra.mxu0 0
          %490 = vmatprep.subr.bf16.mxu0 0
          %491 = vmatpush1.bf16.msra.mxu0 0
          %492 = vmatprep.subr.bf16.mxu0 0
          %493 = vmatpush1.bf16.msra.mxu0 0
          %494 = vmatprep.mubr.bf16.mxu0 0
          %495 = vmatmul.mubr.bf16.gmra.mrb[0].mxu0 %v404
          %v496 = vpop.f32.mrb[0].mxu0
          %v497 = vadd.f32 0.0, %v496
          %v498 = vpop.f32.mrb[0].mxu0
          %v499 = vpop.f32.mrb[0].mxu0
          %v500 = vpop.f32.mrb[0].mxu0
          %501 = vdwg.mxu0
          %v502 = vld [vmem:[%s5] sm:$0xff]
          %v503 = vld [vmem:[%s6] sm:$0xff]
          %v504 = vmul.f32 %v441, %v502
          %506 = vrot.lane.b32.xlu0 %v503, 4
          %v507 = vpop.permute.xlu0 %506
          %v509 = vmul.f32 %v441, %v507
          %511 = vrot.lane.b32.xlu0 %v509, 124
          %v512 = vpop.permute.xlu0 %511
          %v514 = vsub.f32 %v504, %v512
          %v515 = vpack.c.bf16 %v514, %v514
          %vm516 = vcmask 27648
          %517 = vst.msk [vmem:[#allocation3] sm:$0xf] %vm516, %v515
          %519 = vrot.lane.b32.xlu0 %v502, 4
          %v520 = vpop.permute.xlu0 %519
          %v522 = vmul.f32 %v441, %v520
          %v523 = vmul.f32 %v441, %v503
          %525 = vrot.lane.b32.xlu0 %v523, 4
          %v526 = vpop.permute.xlu0 %525
          %v528 = vadd.f32 %v522, %v526
          %v529 = vpack.c.bf16 %v528, %v528
          %vm530 = vcmask 60448
          %531 = vst.msk [vmem:[#allocation3] sm:$0xf] %vm530, %v529
          %v532 = vpack.c.bf16 %v497, %v497
          %vm533 = vcmask 60416
          %534 = vst.msk [vmem:[#allocation4] sm:$0xf] %vm533, %v532
        $region56: #{tpu_custom_call.1} parent=47 // pred_fallthru
          _
        %s535 = smul.u32 %s28, 8
        %s536 = sshra.s32 %s535, 3
        %s537 = sand.u32 %s535, 7
        %s538 = smul.addr %s536, 4
        %s539 = scalar_lea.vmem %s352, %s538
        %v540 = vld [vmem:[%s539] sm:$0xf]
        %v541 = vld [vmem:[%s357] sm:$0xf]
        %v542 = vld [vmem:[%s357 + $0x4] sm:$0xf]
        %v543 = vld [vmem:[%s357 + $0x8] sm:$0xf]
        %v544 = vld [vmem:[%s357 + $0xc] sm:$0xf]
        %v549 = vunpack.c.l.b16 %v541
        %v550 = vunpack.c.l.b16 %v542
        %v551 = vunpack.c.l.b16 %v543
        %v552 = vunpack.c.l.b16 %v544
        %v553 = vpack.c.b16 %v550, %v549
        %v554 = vpack.c.b16 %v552, %v551
        %vm557 = vcmask 261120
        %v559 = vsel %vm557, %v540, 0
        %561 = vmatprep.subr.bf16.mxu0 0
        %562 = vmatpush1.bf16.msra.mxu0 %v553
        %563 = vmatprep.subr.bf16.mxu0 0
        %564 = vmatpush1.bf16.msra.mxu0 %v554
        %565 = vmatprep.subr.bf16.mxu0 0
        %566 = vmatpush1.bf16.msra.mxu0 0
        %567 = vmatprep.subr.bf16.mxu0 0
        %568 = vmatpush1.bf16.msra.mxu0 0
        %569 = vmatprep.subr.bf16.mxu0 0
        %570 = vmatpush1.bf16.msra.mxu0 0
        %571 = vmatprep.subr.bf16.mxu0 0
        %572 = vmatpush1.bf16.msra.mxu0 0
        %573 = vmatprep.subr.bf16.mxu0 0
        %574 = vmatpush1.bf16.msra.mxu0 0
        %575 = vmatprep.subr.bf16.mxu0 0
        %576 = vmatpush1.bf16.msra.mxu0 0
        %577 = vmatprep.subr.bf16.mxu0 0
        %578 = vmatpush1.bf16.msra.mxu0 0
        %579 = vmatprep.subr.bf16.mxu0 0
        %580 = vmatpush1.bf16.msra.mxu0 0
        %581 = vmatprep.subr.bf16.mxu0 0
        %582 = vmatpush1.bf16.msra.mxu0 0
        %583 = vmatprep.subr.bf16.mxu0 0
        %584 = vmatpush1.bf16.msra.mxu0 0
        %585 = vmatprep.subr.bf16.mxu0 0
        %586 = vmatpush1.bf16.msra.mxu0 0
        %587 = vmatprep.subr.bf16.mxu0 0
        %588 = vmatpush1.bf16.msra.mxu0 0
        %589 = vmatprep.subr.bf16.mxu0 0
        %590 = vmatpush1.bf16.msra.mxu0 0
        %591 = vmatprep.subr.bf16.mxu0 0
        %592 = vmatpush1.bf16.msra.mxu0 0
        %593 = vmatprep.mubr.bf16.mxu0 0
        %594 = vmatmul.mubr.bf16.gmra.mrb[0].mxu0 %v559
        %v595 = vpop.f32.mrb[0].mxu0
        %v596 = vadd.f32 0.0, %v595
        %v597 = vpop.f32.mrb[0].mxu0
        %v598 = vpop.f32.mrb[0].mxu0
        %v599 = vpop.f32.mrb[0].mxu0
        %600 = vdwg.mxu0
        %s601 = scalar_lea.vmem %s5, %s535
        %v602 = vld [vmem:[%s601] sm:$0xff]
        %s603 = scalar_lea.vmem %s6, %s535
        %v604 = vld [vmem:[%s603] sm:$0xff]
        %v605 = vlaneseq
        %v606 = vshrl.u32 %v605, 7
        %v607 = vstv %s535
        %v608 = vadd.s32 %v607, %v606
        %v609 = vlaneseq
        %v610 = vand.u32 %v609, 127
        %vm611 = vcmp.gt.s32.totalorder %v610, %v608
        %v612 = vld [vmem:[#allocation3] sm:$0xf]
        %v613 = vld [vmem:[#allocation4] sm:$0xf]
        %v614 = vmul.f32 %v596, %v602
        %616 = vrot.lane.b32.xlu0 %v604, 4
        %v617 = vpop.permute.xlu0 %616
        %v619 = vmul.f32 %v596, %v617
        %621 = vrot.lane.b32.xlu0 %v619, 124
        %v622 = vpop.permute.xlu0 %621
        %v624 = vsub.f32 %v614, %v622
        %v625 = vpack.c.bf16 %v624, %v624
        %vm626 = vcmask 27648
        %627 = vst.msk [vmem:[#allocation5] sm:$0xf] %vm626, %v625
        %629 = vrot.lane.b32.xlu0 %v602, 4
        %v630 = vpop.permute.xlu0 %629
        %v632 = vmul.f32 %v596, %v630
        %v633 = vmul.f32 %v596, %v604
        %635 = vrot.lane.b32.xlu0 %v633, 4
        %v636 = vpop.permute.xlu0 %635
        %v638 = vadd.f32 %v632, %v636
        %v639 = vpack.c.bf16 %v638, %v638
        %vm640 = vcmask 60448
        %641 = vst.msk [vmem:[#allocation5] sm:$0xf] %vm640, %v639
        %v642 = vld [vmem:[#allocation5] sm:$0xf]
        %vm643 = vcmask 64512
        %v645 = vsel %vm643, %v642, 0
        %v648 = vsel %vm643, %v612, 0
        %650 = vmatprep.subr.bf16.mxu0 0
        %651 = vmatpush1.bf16.xpose.msra.mxu0 %v648
        %652 = vmatprep.subr.bf16.mxu0 0
        %653 = vmatpush1.bf16.xpose.msra.mxu0 0
        %654 = vmatprep.subr.bf16.mxu0 0
        %655 = vmatpush1.bf16.xpose.msra.mxu0 0
        %656 = vmatprep.subr.bf16.mxu0 0
        %657 = vmatpush1.bf16.xpose.msra.mxu0 0
        %658 = vmatprep.subr.bf16.mxu0 0
        %659 = vmatpush1.bf16.xpose.msra.mxu0 0
        %660 = vmatprep.subr.bf16.mxu0 0
        %661 = vmatpush1.bf16.xpose.msra.mxu0 0
        %662 = vmatprep.subr.bf16.mxu0 0
        %663 = vmatpush1.bf16.xpose.msra.mxu0 0
        %664 = vmatprep.subr.bf16.mxu0 0
        %665 = vmatpush1.bf16.xpose.msra.mxu0 0
        %666 = vmatprep.subr.bf16.mxu0 0
        %667 = vmatpush1.bf16.xpose.msra.mxu0 0
        %668 = vmatprep.subr.bf16.mxu0 0
        %669 = vmatpush1.bf16.xpose.msra.mxu0 0
        %670 = vmatprep.subr.bf16.mxu0 0
        %671 = vmatpush1.bf16.xpose.msra.mxu0 0
        %672 = vmatprep.subr.bf16.mxu0 0
        %673 = vmatpush1.bf16.xpose.msra.mxu0 0
        %674 = vmatprep.subr.bf16.mxu0 0
        %675 = vmatpush1.bf16.xpose.msra.mxu0 0
        %676 = vmatprep.subr.bf16.mxu0 0
        %677 = vmatpush1.bf16.xpose.msra.mxu0 0
        %678 = vmatprep.subr.bf16.mxu0 0
        %679 = vmatpush1.bf16.xpose.msra.mxu0 0
        %680 = vmatprep.subr.bf16.mxu0 0
        %681 = vmatpush1.bf16.xpose.msra.mxu0 0
        %682 = vmatprep.mubr.bf16.mxu0 0
        %683 = vmatmul.mubr.bf16.gmra.mrb[0].mxu0 %v645
        %v684 = vpop.f32.mrb[0].mxu0
        %v685 = vadd.f32 0.0, %v684
        %v686 = vpop.f32.mrb[0].mxu0
        %v687 = vpop.f32.mrb[0].mxu0
        %v688 = vpop.f32.mrb[0].mxu0
        %689 = vdwg.mxu0
        %v690 = vsel %vm611, -inf, %v685
        %v691 = vpack.c.bf16 %v690, %v690
        %v693 = vsel %vm643, %v691, 0
        %vm695 = vcmask 1043456
        %v697 = vsel %vm695, %v613, 0
        %699 = vmatprep.subr.bf16.mxu0 0
        %700 = vmatpush1.bf16.msra.mxu0 %v697
        %701 = vmatprep.subr.bf16.mxu0 0
        %702 = vmatpush1.bf16.msra.mxu0 0
        %703 = vmatprep.subr.bf16.mxu0 0
        %704 = vmatpush1.bf16.msra.mxu0 0
        %705 = vmatprep.subr.bf16.mxu0 0
        %706 = vmatpush1.bf16.msra.mxu0 0
        %707 = vmatprep.subr.bf16.mxu0 0
        %708 = vmatpush1.bf16.msra.mxu0 0
        %709 = vmatprep.subr.bf16.mxu0 0
        %710 = vmatpush1.bf16.msra.mxu0 0
        %711 = vmatprep.subr.bf16.mxu0 0
        %712 = vmatpush1.bf16.msra.mxu0 0
        %713 = vmatprep.subr.bf16.mxu0 0
        %714 = vmatpush1.bf16.msra.mxu0 0
        %715 = vmatprep.subr.bf16.mxu0 0
        %716 = vmatpush1.bf16.msra.mxu0 0
        %717 = vmatprep.subr.bf16.mxu0 0
        %718 = vmatpush1.bf16.msra.mxu0 0
        %719 = vmatprep.subr.bf16.mxu0 0
        %720 = vmatpush1.bf16.msra.mxu0 0
        %721 = vmatprep.subr.bf16.mxu0 0
        %722 = vmatpush1.bf16.msra.mxu0 0
        %723 = vmatprep.subr.bf16.mxu0 0
        %724 = vmatpush1.bf16.msra.mxu0 0
        %725 = vmatprep.subr.bf16.mxu0 0
        %726 = vmatpush1.bf16.msra.mxu0 0
        %727 = vmatprep.subr.bf16.mxu0 0
        %728 = vmatpush1.bf16.msra.mxu0 0
        %729 = vmatprep.subr.bf16.mxu0 0
        %730 = vmatpush1.bf16.msra.mxu0 0
        %731 = vmatprep.mubr.bf16.mxu0 0
        %732 = vmatmul.mubr.bf16.gmra.mrb[0].mxu0 %v693
        %v733 = vpop.f32.mrb[0].mxu0
        %v734 = vadd.f32 0.0, %v733
        %v735 = vpop.f32.mrb[0].mxu0
        %v736 = vpop.f32.mrb[0].mxu0
        %v737 = vpop.f32.mrb[0].mxu0
        %738 = vdwg.mxu0
        %s739 = scalar_lea.vmem [#allocation2], %s535
        %v740 = vld [vmem:[%s739] sm:$0xff]
        %v741 = vpack.c.bf16 %v734, %v734
        %v742 = vld [vmem:[%s372] sm:$0xf]
        %v744 = vsel %vm643, %v741, 0
        %v747 = vsel %vm695, %v742, 0
        %749 = vmatprep.subr.bf16.mxu0 0
        %750 = vmatpush1.bf16.msra.mxu0 %v747
        %751 = vmatprep.subr.bf16.mxu0 0
        %752 = vmatpush1.bf16.msra.mxu0 0
        %753 = vmatprep.subr.bf16.mxu0 0
        %754 = vmatpush1.bf16.msra.mxu0 0
        %755 = vmatprep.subr.bf16.mxu0 0
        %756 = vmatpush1.bf16.msra.mxu0 0
        %757 = vmatprep.subr.bf16.mxu0 0
        %758 = vmatpush1.bf16.msra.mxu0 0
        %759 = vmatprep.subr.bf16.mxu0 0
        %760 = vmatpush1.bf16.msra.mxu0 0
        %761 = vmatprep.subr.bf16.mxu0 0
        %762 = vmatpush1.bf16.msra.mxu0 0
        %763 = vmatprep.subr.bf16.mxu0 0
        %764 = vmatpush1.bf16.msra.mxu0 0
        %765 = vmatprep.subr.bf16.mxu0 0
        %766 = vmatpush1.bf16.msra.mxu0 0
        %767 = vmatprep.subr.bf16.mxu0 0
        %768 = vmatpush1.bf16.msra.mxu0 0
        %769 = vmatprep.subr.bf16.mxu0 0
        %770 = vmatpush1.bf16.msra.mxu0 0
        %771 = vmatprep.subr.bf16.mxu0 0
        %772 = vmatpush1.bf16.msra.mxu0 0
        %773 = vmatprep.subr.bf16.mxu0 0
        %774 = vmatpush1.bf16.msra.mxu0 0
        %775 = vmatprep.subr.bf16.mxu0 0
        %776 = vmatpush1.bf16.msra.mxu0 0
        %777 = vmatprep.subr.bf16.mxu0 0
        %778 = vmatpush1.bf16.msra.mxu0 0
        %779 = vmatprep.subr.bf16.mxu0 0
        %780 = vmatpush1.bf16.msra.mxu0 0
        %781 = vmatprep.mubr.bf16.mxu0 0
        %782 = vmatmul.mubr.bf16.gmra.mrb[0].mxu0 %v744
        %v783 = vpop.f32.mrb[0].mxu0
        %v784 = vadd.f32 0.0, %v783
        %v785 = vpop.f32.mrb[0].mxu0
        %v786 = vpop.f32.mrb[0].mxu0
        %v787 = vpop.f32.mrb[0].mxu0
        %788 = vdwg.mxu0
        %v789 = vadd.f32 %v740, %v784
        %790 = vst.msk [vmem:[%s739] sm:$0xff] %vm557, %v789
        %791 = vrot.lane.b32.xlu0 %v602, 8
        %v792 = vpop.permute.xlu0 %791
        %v794 = vmul.f32 %v596, %v792
        %795 = vrot.lane.b32.xlu0 %v604, 12
        %v796 = vpop.permute.xlu0 %795
        %v798 = vmul.f32 %v596, %v796
        %800 = vrot.lane.b32.xlu0 %v798, 124
        %v801 = vpop.permute.xlu0 %800
        %v803 = vsub.f32 %v794, %v801
        %v804 = vpack.c.bf16 %v803, %v803
        %v806 = vunpack.c.l.b16 %v804
        %v807 = vpack.c.b16 %v806, %v806
        %808 = vrot.lane.b32.xlu0 %v807, 120
        %v809 = vpop.permute.xlu0 %808
        %811 = vst.msk [vmem:[#allocation5] sm:$0xf] %vm626, %v809
        %812 = vrot.lane.b32.xlu0 %v602, 12
        %v813 = vpop.permute.xlu0 %812
        %v815 = vmul.f32 %v596, %v813
        %816 = vrot.lane.b32.xlu0 %v604, 8
        %v817 = vpop.permute.xlu0 %816
        %v819 = vmul.f32 %v596, %v817
        %821 = vrot.lane.b32.xlu0 %v819, 4
        %v822 = vpop.permute.xlu0 %821
        %v824 = vadd.f32 %v815, %v822
        %v825 = vpack.c.bf16 %v824, %v824
        %v827 = vunpack.c.l.b16 %v825
        %v828 = vpack.c.b16 %v827, %v827
        %829 = vrot.lane.b32.xlu0 %v828, 120
        %v830 = vpop.permute.xlu0 %829
        %832 = vst.msk [vmem:[#allocation5] sm:$0xf] %vm640, %v830
        %v833 = vld [vmem:[#allocation5] sm:$0xf]
        %v835 = vsel %vm643, %v833, 0
        %837 = vmatprep.subr.bf16.mxu0 0
        %838 = vmatpush1.bf16.xpose.msra.mxu0 %v648
        %839 = vmatprep.subr.bf16.mxu0 0
        %840 = vmatpush1.bf16.xpose.msra.mxu0 0
        %841 = vmatprep.subr.bf16.mxu0 0
        %842 = vmatpush1.bf16.xpose.msra.mxu0 0
        %843 = vmatprep.subr.bf16.mxu0 0
        %844 = vmatpush1.bf16.xpose.msra.mxu0 0
        %845 = vmatprep.subr.bf16.mxu0 0
        %846 = vmatpush1.bf16.xpose.msra.mxu0 0
        %847 = vmatprep.subr.bf16.mxu0 0
        %848 = vmatpush1.bf16.xpose.msra.mxu0 0
        %849 = vmatprep.subr.bf16.mxu0 0
        %850 = vmatpush1.bf16.xpose.msra.mxu0 0
        %851 = vmatprep.subr.bf16.mxu0 0
        %852 = vmatpush1.bf16.xpose.msra.mxu0 0
        %853 = vmatprep.subr.bf16.mxu0 0
        %854 = vmatpush1.bf16.xpose.msra.mxu0 0
        %855 = vmatprep.subr.bf16.mxu0 0
        %856 = vmatpush1.bf16.xpose.msra.mxu0 0
        %857 = vmatprep.subr.bf16.mxu0 0
        %858 = vmatpush1.bf16.xpose.msra.mxu0 0
        %859 = vmatprep.subr.bf16.mxu0 0
        %860 = vmatpush1.bf16.xpose.msra.mxu0 0
        %861 = vmatprep.subr.bf16.mxu0 0
        %862 = vmatpush1.bf16.xpose.msra.mxu0 0
        %863 = vmatprep.subr.bf16.mxu0 0
        %864 = vmatpush1.bf16.xpose.msra.mxu0 0
        %865 = vmatprep.subr.bf16.mxu0 0
        %866 = vmatpush1.bf16.xpose.msra.mxu0 0
        %867 = vmatprep.subr.bf16.mxu0 0
        %868 = vmatpush1.bf16.xpose.msra.mxu0 0
        %869 = vmatprep.mubr.bf16.mxu0 0
        %870 = vmatmul.mubr.bf16.gmra.mrb[0].mxu0 %v835
        %v871 = vpop.f32.mrb[0].mxu0
        %v872 = vadd.f32 0.0, %v871
        %v873 = vpop.f32.mrb[0].mxu0
        %v874 = vpop.f32.mrb[0].mxu0
        %v875 = vpop.f32.mrb[0].mxu0
        %876 = vdwg.mxu0
        %v877 = vsel %vm611, -inf, %v872
        %v878 = vpack.c.bf16 %v877, %v877
        %v880 = vsel %vm643, %v878, 0
        %882 = vmatprep.subr.bf16.mxu0 0
        %883 = vmatpush1.bf16.msra.mxu0 %v697
        %884 = vmatprep.subr.bf16.mxu0 0
        %885 = vmatpush1.bf16.msra.mxu0 0
        %886 = vmatprep.subr.bf16.mxu0 0
        %887 = vmatpush1.bf16.msra.mxu0 0
        %888 = vmatprep.subr.bf16.mxu0 0
        %889 = vmatpush1.bf16.msra.mxu0 0
        %890 = vmatprep.subr.bf16.mxu0 0
        %891 = vmatpush1.bf16.msra.mxu0 0
        %892 = vmatprep.subr.bf16.mxu0 0
        %893 = vmatpush1.bf16.msra.mxu0 0
        %894 = vmatprep.subr.bf16.mxu0 0
        %895 = vmatpush1.bf16.msra.mxu0 0
        %896 = vmatprep.subr.bf16.mxu0 0
        %897 = vmatpush1.bf16.msra.mxu0 0
        %898 = vmatprep.subr.bf16.mxu0 0
        %899 = vmatpush1.bf16.msra.mxu0 0
        %900 = vmatprep.subr.bf16.mxu0 0
        %901 = vmatpush1.bf16.msra.mxu0 0
        %902 = vmatprep.subr.bf16.mxu0 0
        %903 = vmatpush1.bf16.msra.mxu0 0
        %904 = vmatprep.subr.bf16.mxu0 0
        %905 = vmatpush1.bf16.msra.mxu0 0
        %906 = vmatprep.subr.bf16.mxu0 0
        %907 = vmatpush1.bf16.msra.mxu0 0
        %908 = vmatprep.subr.bf16.mxu0 0
        %909 = vmatpush1.bf16.msra.mxu0 0
        %910 = vmatprep.subr.bf16.mxu0 0
        %911 = vmatpush1.bf16.msra.mxu0 0
        %912 = vmatprep.subr.bf16.mxu0 0
        %913 = vmatpush1.bf16.msra.mxu0 0
        %914 = vmatprep.mubr.bf16.mxu0 0
        %915 = vmatmul.mubr.bf16.gmra.mrb[0].mxu0 %v880
        %v916 = vpop.f32.mrb[0].mxu0
        %v917 = vadd.f32 0.0, %v916
        %v918 = vpop.f32.mrb[0].mxu0
        %v919 = vpop.f32.mrb[0].mxu0
        %v920 = vpop.f32.mrb[0].mxu0
        %921 = vdwg.mxu0
        %v922 = vld [vmem:[%s739] sm:$0xff]
        %v923 = vpack.c.bf16 %v917, %v917
        %v924 = vld [vmem:[%s372 + $0x4] sm:$0xf]
        %v926 = vsel %vm643, %v923, 0
        %v929 = vsel %vm695, %v924, 0
        %931 = vmatprep.subr.bf16.mxu0 0
        %932 = vmatpush1.bf16.msra.mxu0 %v929
        %933 = vmatprep.subr.bf16.mxu0 0
        %934 = vmatpush1.bf16.msra.mxu0 0
        %935 = vmatprep.subr.bf16.mxu0 0
        %936 = vmatpush1.bf16.msra.mxu0 0
        %937 = vmatprep.subr.bf16.mxu0 0
        %938 = vmatpush1.bf16.msra.mxu0 0
        %939 = vmatprep.subr.bf16.mxu0 0
        %940 = vmatpush1.bf16.msra.mxu0 0
        %941 = vmatprep.subr.bf16.mxu0 0
        %942 = vmatpush1.bf16.msra.mxu0 0
        %943 = vmatprep.subr.bf16.mxu0 0
        %944 = vmatpush1.bf16.msra.mxu0 0
        %945 = vmatprep.subr.bf16.mxu0 0
        %946 = vmatpush1.bf16.msra.mxu0 0
        %947 = vmatprep.subr.bf16.mxu0 0
        %948 = vmatpush1.bf16.msra.mxu0 0
        %949 = vmatprep.subr.bf16.mxu0 0
        %950 = vmatpush1.bf16.msra.mxu0 0
        %951 = vmatprep.subr.bf16.mxu0 0
        %952 = vmatpush1.bf16.msra.mxu0 0
        %953 = vmatprep.subr.bf16.mxu0 0
        %954 = vmatpush1.bf16.msra.mxu0 0
        %955 = vmatprep.subr.bf16.mxu0 0
        %956 = vmatpush1.bf16.msra.mxu0 0
        %957 = vmatprep.subr.bf16.mxu0 0
        %958 = vmatpush1.bf16.msra.mxu0 0
        %959 = vmatprep.subr.bf16.mxu0 0
        %960 = vmatpush1.bf16.msra.mxu0 0
        %961 = vmatprep.subr.bf16.mxu0 0
        %962 = vmatpush1.bf16.msra.mxu0 0
        %963 = vmatprep.mubr.bf16.mxu0 0
        %964 = vmatmul.mubr.bf16.gmra.mrb[0].mxu0 %v926
        %v965 = vpop.f32.mrb[0].mxu0
        %v966 = vadd.f32 0.0, %v965
        %v967 = vpop.f32.mrb[0].mxu0
        %v968 = vpop.f32.mrb[0].mxu0
        %v969 = vpop.f32.mrb[0].mxu0
        %970 = vdwg.mxu0
        %v971 = vadd.f32 %v922, %v966
        %972 = vst.msk [vmem:[%s739] sm:$0xff] %vm557, %v971
        %p973 = scmp.eq.s32.totalorder %s27, 1
        // Predicated region
        $region57: #{tpu_custom_call.1} parent=47 // pred_check
          %p974 = pneg %p973
        $region58: #{tpu_custom_call.1} parent=47 // pred_check_branch
          %976 = sbr.rel (%p974) target = $region60
        $region59: #{tpu_custom_call.1} parent=47 // pred_region
          %v977 = vld [vmem:[%s739] sm:$0xff]
          %s978 = scalar_lea.vmem %s348, %s535 [#allocation6]
          %979 = vst.msk [vmem:[%s978] sm:$0xff] %vm557, %v977
        $region60: #{tpu_custom_call.1} parent=47 // pred_fallthru
          _
        %s980 = sand.u32 %s220, 1
        %s981 = scalar_lea.sflag [#allocation7], %s980
        %s982 = sand.u32 %s220, 1
        %s983 = smul.addr %s982, 8
        %s984 = scalar_lea.vmem [#allocation6], %s983
        // Predicated region
        $region61: #{tpu_custom_call.1} parent=47 // pred_check
          %p985 = pneg %p230
        $region62: #{tpu_custom_call.1} parent=47 // pred_check_branch
          %987 = sbr.rel (%p985) target = $region64
        $region63: #{tpu_custom_call.1} parent=47 // pred_region
          %s989 = ssub.s32 128, 128
          %990 = vsyncadd %s981, %s989
          %s991 = smul.addr %s26, 128
          %s992 = scalar_lea.hbm %s7, %s991
          %s994 = sshll.u32 %s984, 4
          %s995 = int_to_ptr.vmem [resolvable:$true] %s994
          %997 = dma.vmem_to_hbm [thread:$0]  %s995, 128, %s992, %s981
        $region64: #{tpu_custom_call.1} parent=47 // pred_fallthru
          _
      $region48: #{tpu_custom_call.1} parent=5 // pred_fallthru
        _
      %p998 = scmp.le.s32.totalorder 2, %s16
      // Predicated region
      $region65: #{tpu_custom_call.1} parent=5 // pred_check
        %p999 = pneg %p998
      $region66: #{tpu_custom_call.1} parent=5 // pred_check_branch
        %1001 = sbr.rel (%p999) target = $region68
      $region67: #{tpu_custom_call.1} parent=5 // pred_region
        %s1002 = ssub.s32 %s16, 2
        // Predicated region
        $region69: #{tpu_custom_call.1} parent=67 // pred_check
          %p1003 = pneg %p236
        $region70: #{tpu_custom_call.1} parent=67 // pred_check_branch
          %1005 = sbr.rel (%p1003) target = $region72
        $region71: #{tpu_custom_call.1} parent=67 // pred_region
          %s1006 = sand.u32 %s221, 1
          %s1007 = scalar_lea.sflag [#allocation7], %s1006
          %s1008 = sand.u32 %s221, 1
          %s1009 = smul.addr %s1008, 8
          %s1010 = scalar_lea.vmem [#allocation6], %s1009
          %1011 = dma.done %s1007, 128
        $region72: #{tpu_custom_call.1} parent=67 // pred_fallthru
          _
      $region68: #{tpu_custom_call.1} parent=5 // pred_fallthru
        _
    $region6: #{tpu_custom_call.1} parent=1 // loop_footer
      %s20 = sadd.s32 1, %s16
    $region7: #{tpu_custom_call.1} parent=1 // loop_footer_branch
      %15 = sbr.rel target = $region3
    $region8: #{tpu_custom_call.1} parent=1 // loop_exit
      _
    %1012 = vsyncpa [#allocation7], 1
    %s1013 = scalar_lea.sflag [#allocation7], 1
    %1014 = vsyncpa %s1013, 1

</llo_original>
